<compile_context>
chip_gen: v7x
topology: tpu7x:2x2x1
jax: 0.10.0
libtpu: 0.0.40
codegen_flags: <defaults>
</compile_context>

<pallas_src>
import functools

import jax
import jax.numpy as jnp
from jax.experimental import pallas as pl
from jax.experimental.pallas import tpu as pltpu


def _round_up(n, m):
    return ((n + m - 1) // m) * m


def _dataset_header_kernel(
    x_ref,
    w1_ref, b1_ref,
    w2_ref, b2_ref,
    w3_ref, b3_ref,
    w4_ref, b4_ref,
    w5_ref, b5_ref,
    o_ref,
):
    # Fully fused 5-layer MLP for one batch tile. All matmuls hit the MXU with
    # f32 accumulation (operands f32 or bf16); tanh lowers to the EUP (its own
    # bundle slot). Biases are f32.
    cdt = w1_ref.dtype  # compute dtype of the matmul operands
    h = x_ref[...].astype(cdt)
    h = jnp.tanh(jnp.dot(h, w1_ref[...], preferred_element_type=jnp.float32) + b1_ref[...])
    h = jnp.tanh(jnp.dot(h.astype(cdt), w2_ref[...], preferred_element_type=jnp.float32) + b2_ref[...])
    h = jnp.tanh(jnp.dot(h.astype(cdt), w3_ref[...], preferred_element_type=jnp.float32) + b3_ref[...])
    h = jnp.tanh(jnp.dot(h.astype(cdt), w4_ref[...], preferred_element_type=jnp.float32) + b4_ref[...])
    out = jnp.dot(h.astype(cdt), w5_ref[...], preferred_element_type=jnp.float32) + b5_ref[...]
    o_ref[...] = out.astype(o_ref.dtype)


def prepare_params(params, compute_dtype=jnp.float32):
    """One-time weight preparation (hoisted out of the forward pass).

    Transposes PyTorch (out, in) weights to (in, out), zero-pads the hidden
    dimension to a multiple of 128 (lane-dense intermediates; zero pad keeps
    padded lanes exactly 0 through tanh), and casts weights to `compute_dtype`
    (bf16 recommended on v6e/v7x). Biases stay f32, stored as (1, dim) rows.
    The latent (input) and output dims are left un-padded.
    """
    header_dim, latent_dim = params["w1"].shape
    output_dim = params["w5"].shape[0]
    assert params["w2"].shape == (header_dim, header_dim)
    assert params["w3"].shape == (header_dim, header_dim)
    assert params["w4"].shape == (header_dim, header_dim)
    assert params["w5"].shape == (output_dim, header_dim)

    hp = _round_up(header_dim, 128)

    def prep(w, b, in_pad, out_pad):
        wt = jnp.asarray(w, jnp.float32).T  # (in, out)
        wt = jnp.pad(wt, ((0, in_pad - wt.shape[0]), (0, out_pad - wt.shape[1])))
        bp = jnp.pad(jnp.asarray(b, jnp.float32).reshape(1, -1),
                     ((0, 0), (0, out_pad - b.shape[0])))
        return wt.astype(compute_dtype), bp  # bias stays f32

    w1, b1 = prep(params["w1"], params["b1"], latent_dim, hp)
    w2, b2 = prep(params["w2"], params["b2"], hp, hp)
    w3, b3 = prep(params["w3"], params["b3"], hp, hp)
    w4, b4 = prep(params["w4"], params["b4"], hp, hp)
    w5, b5 = prep(params["w5"], params["b5"], hp, output_dim)
    return {
        "w1": w1, "b1": b1,
        "w2": w2, "b2": b2,
        "w3": w3, "b3": b3,
        "w4": w4, "b4": b4,
        "w5": w5, "b5": b5,
    }


@functools.partial(jax.jit, static_argnames=("block_b",))
def dataset_header_forward(x, prep, block_b=512):
    """Forward pass of DatasetHeader.

    x:    (B, latent_dim) float32.
    prep: output of prepare_params() (prepared once, reused every call).
    block_b: max rows per grid step. Capped at ceil(B/2) (rounded to 8) so the
             parallel grid axis has >= 2 programs for v7x megacore when B > 8.
    """
    B, latent_dim = x.shape
    hp = prep["w2"].shape[0]
    output_dim = prep["w5"].shape[1]

    # ---- batch tiling: no batch padding; partial last tile handled by Pallas ----
    if B <= 8:
        bb = B  # full-dim block (legal even if B is not a multiple of 8)
    else:
        bb = max(8, min(block_b, _round_up(-(-B // 2), 8)))
    grid = (pl.cdiv(B, bb),)

    def resident(shape):
        # Full-extent block, same tile every grid step -> stays in VMEM.
        return pl.BlockSpec(shape, lambda i: (0, 0))

    itemsize = jnp.dtype(prep["w1"].dtype).itemsize
    weight_bytes = sum(int(a.size) * jnp.dtype(a.dtype).itemsize for a in prep.values())
    cost = pl.CostEstimate(
        flops=2 * B * (latent_dim * hp + 3 * hp * hp + hp * output_dim),
        transcendentals=4 * B * hp,
        bytes_accessed=4 * B * latent_dim + 4 * B * output_dim + weight_bytes,
    )
    del itemsize  # (weight bytes already include dtype width)

    out = pl.pallas_call(
        _dataset_header_kernel,
        out_shape=jax.ShapeDtypeStruct((B, output_dim), jnp.float32),
        grid_spec=pl.GridSpec(
            grid=grid,
            in_specs=[
                pl.BlockSpec((bb, latent_dim), lambda i: (i, 0)),   # x tile (un-padded)
                resident((latent_dim, hp)), resident((1, hp)),      # w1, b1
                resident((hp, hp)), resident((1, hp)),              # w2, b2
                resident((hp, hp)), resident((1, hp)),              # w3, b3
                resident((hp, hp)), resident((1, hp)),              # w4, b4
                resident((hp, output_dim)), resident((1, output_dim)),  # w5, b5
            ],
            out_specs=pl.BlockSpec((bb, output_dim), lambda i: (i, 0)),
        ),
        compiler_params=pltpu.CompilerParams(
            dimension_semantics=("parallel",),
        ),
        cost_estimate=cost,
    )(x, prep["w1"], prep["b1"], prep["w2"], prep["b2"], prep["w3"], prep["b3"],
      prep["w4"], prep["b4"], prep["w5"], prep["b5"])

    return out


def init_params(key, latent_dim, header_dim, output_dim):
    """Deterministic synthetic params, PyTorch nn.Linear shapes: W (out, in), b (out,)."""
    ks = jax.random.split(key, 10)

    def lin(kw, kb, fan_in, fan_out):
        bound = 1.0 / jnp.sqrt(fan_in)
        w = jax.random.uniform(kw, (fan_out, fan_in), jnp.float32, -bound, bound)
        b = jax.random.uniform(kb, (fan_out,), jnp.float32, -bound, bound)
        return w, b

    w1, b1 = lin(ks[0], ks[1], latent_dim, header_dim)
    w2, b2 = lin(ks[2], ks[3], header_dim, header_dim)
    w3, b3 = lin(ks[4], ks[5], header_dim, header_dim)
    w4, b4 = lin(ks[6], ks[7], header_dim, header_dim)
    w5, b5 = lin(ks[8], ks[9], header_dim, output_dim)
    return {
        "w1": w1, "b1": b1,
        "w2": w2, "b2": b2,
        "w3": w3, "b3": b3,
        "w4": w4, "b4": b4,
        "w5": w5, "b5": b5,
    }


def reference_forward(x, p):
    h = jnp.tanh(x @ p["w1"].T + p["b1"])
    h = jnp.tanh(h @ p["w2"].T + p["b2"])
    h = jnp.tanh(h @ p["w3"].T + p["b3"])
    h = jnp.tanh(h @ p["w4"].T + p["b4"])
    return h @ p["w5"].T + p["b5"]


if __name__ == "__main__":
    latent_dim, header_dim, output_dim = 32, 64, 16
    batch = 8

    key = jax.random.PRNGKey(0)
    k_x, k_p = jax.random.split(key)
    x = jax.random.normal(k_x, (batch, latent_dim), dtype=jnp.float32)
    params = init_params(k_p, latent_dim, header_dim, output_dim)
    ref = reference_forward(x, params)

    # --- f32 compute path (strict tolerance) ---
    prep_f32 = prepare_params(params, compute_dtype=jnp.float32)  # one-time prep
    out = jax.block_until_ready(dataset_header_forward(x, prep_f32))
    assert out.shape == (batch, output_dim), out.shape
    assert jnp.allclose(out, ref, atol=1e-4, rtol=1e-4), "f32 mismatch vs reference"

    # --- bf16 weight/input compute path (v6e/v7x MXU), f32 accumulation ---
    prep_bf16 = prepare_params(params, compute_dtype=jnp.bfloat16)
    out_bf16 = jax.block_until_ready(dataset_header_forward(x, prep_bf16))
    assert out_bf16.shape == (batch, output_dim), out_bf16.shape
    # loose tolerance: difference vs f32 reference is bf16 quantization noise
    assert jnp.allclose(out_bf16, ref, atol=1e-1, rtol=5e-2), "bf16 mismatch vs reference"

    print("KERNEL_OK")
</pallas_src>

<mosaic_0001>
module attributes {stable_mosaic.version = 11 : i64} {
  func.func @_dataset_header_kernel(%arg0: i32, %arg1: memref<8x32xf32, #tpu.memory_space<vmem>>, %arg2: memref<32x128xf32, #tpu.memory_space<vmem>>, %arg3: memref<1x128xf32, #tpu.memory_space<vmem>>, %arg4: memref<128x128xf32, #tpu.memory_space<vmem>>, %arg5: memref<1x128xf32, #tpu.memory_space<vmem>>, %arg6: memref<128x128xf32, #tpu.memory_space<vmem>>, %arg7: memref<1x128xf32, #tpu.memory_space<vmem>>, %arg8: memref<128x128xf32, #tpu.memory_space<vmem>>, %arg9: memref<1x128xf32, #tpu.memory_space<vmem>>, %arg10: memref<128x16xf32, #tpu.memory_space<vmem>>, %arg11: memref<1x16xf32, #tpu.memory_space<vmem>>, %arg12: memref<8x16xf32, #tpu.memory_space<vmem>>) attributes {dimension_semantics = [#tpu.dimension_semantics<parallel>], iteration_bounds = array<i64: 1>, scalar_prefetch = 0 : i64, scratch_operands = 0 : i64, tpu.core_type = #tpu.core_type<tc>, window_params = [{transform_indices = @transform_0, window_bounds = array<i64: 8, 32>}, {pipeline_mode = #tpu.pipeline_mode<synchronous>, transform_indices = @transform_1, window_bounds = array<i64: 32, 128>}, {pipeline_mode = #tpu.pipeline_mode<synchronous>, transform_indices = @transform_2, window_bounds = array<i64: 1, 128>}, {pipeline_mode = #tpu.pipeline_mode<synchronous>, transform_indices = @transform_3, window_bounds = array<i64: 128, 128>}, {pipeline_mode = #tpu.pipeline_mode<synchronous>, transform_indices = @transform_4, window_bounds = array<i64: 1, 128>}, {pipeline_mode = #tpu.pipeline_mode<synchronous>, transform_indices = @transform_5, window_bounds = array<i64: 128, 128>}, {pipeline_mode = #tpu.pipeline_mode<synchronous>, transform_indices = @transform_6, window_bounds = array<i64: 1, 128>}, {pipeline_mode = #tpu.pipeline_mode<synchronous>, transform_indices = @transform_7, window_bounds = array<i64: 128, 128>}, {pipeline_mode = #tpu.pipeline_mode<synchronous>, transform_indices = @transform_8, window_bounds = array<i64: 1, 128>}, {pipeline_mode = #tpu.pipeline_mode<synchronous>, transform_indices = @transform_9, window_bounds = array<i64: 128, 16>}, {pipeline_mode = #tpu.pipeline_mode<synchronous>, transform_indices = @transform_10, window_bounds = array<i64: 1, 16>}, {transform_indices = @transform_11, window_bounds = array<i64: 8, 16>}]} {
    %c0 = arith.constant 0 : index
    %c0_0 = arith.constant 0 : index
    %0 = vector.load %arg1[%c0, %c0_0] : memref<8x32xf32, #tpu.memory_space<vmem>>, vector<8x32xf32>
    %c0_1 = arith.constant 0 : index
    %c0_2 = arith.constant 0 : index
    %1 = vector.load %arg2[%c0_1, %c0_2] : memref<32x128xf32, #tpu.memory_space<vmem>>, vector<32x128xf32>
    %cst = arith.constant dense<0.000000e+00> : vector<8x128xf32>
    %2 = tpu.matmul %0, %1, %cst {dimension_numbers = #tpu.dot_dimension_numbers<[1], [0], [0], [1], [0, 0, 1, 1], [], []>} : vector<8x32xf32>, vector<32x128xf32>, vector<8x128xf32> -> vector<8x128xf32>
    %c0_3 = arith.constant 0 : index
    %c0_4 = arith.constant 0 : index
    %3 = vector.load %arg3[%c0_3, %c0_4] : memref<1x128xf32, #tpu.memory_space<vmem>>, vector<1x128xf32>
    %4 = vector.broadcast %3 : vector<1x128xf32> to vector<8x128xf32>
    %5 = arith.addf %2, %4 : vector<8x128xf32>
    %6 = math.tanh %5 : vector<8x128xf32>
    %c0_5 = arith.constant 0 : index
    %c0_6 = arith.constant 0 : index
    %7 = vector.load %arg4[%c0_5, %c0_6] : memref<128x128xf32, #tpu.memory_space<vmem>>, vector<128x128xf32>
    %cst_7 = arith.constant dense<0.000000e+00> : vector<8x128xf32>
    %8 = tpu.matmul %6, %7, %cst_7 {dimension_numbers = #tpu.dot_dimension_numbers<[1], [0], [0], [1], [0, 0, 1, 1], [], []>} : vector<8x128xf32>, vector<128x128xf32>, vector<8x128xf32> -> vector<8x128xf32>
    %c0_8 = arith.constant 0 : index
    %c0_9 = arith.constant 0 : index
    %9 = vector.load %arg5[%c0_8, %c0_9] : memref<1x128xf32, #tpu.memory_space<vmem>>, vector<1x128xf32>
    %10 = vector.broadcast %9 : vector<1x128xf32> to vector<8x128xf32>
    %11 = arith.addf %8, %10 : vector<8x128xf32>
    %12 = math.tanh %11 : vector<8x128xf32>
    %c0_10 = arith.constant 0 : index
    %c0_11 = arith.constant 0 : index
    %13 = vector.load %arg6[%c0_10, %c0_11] : memref<128x128xf32, #tpu.memory_space<vmem>>, vector<128x128xf32>
    %cst_12 = arith.constant dense<0.000000e+00> : vector<8x128xf32>
    %14 = tpu.matmul %12, %13, %cst_12 {dimension_numbers = #tpu.dot_dimension_numbers<[1], [0], [0], [1], [0, 0, 1, 1], [], []>} : vector<8x128xf32>, vector<128x128xf32>, vector<8x128xf32> -> vector<8x128xf32>
    %c0_13 = arith.constant 0 : index
    %c0_14 = arith.constant 0 : index
    %15 = vector.load %arg7[%c0_13, %c0_14] : memref<1x128xf32, #tpu.memory_space<vmem>>, vector<1x128xf32>
    %16 = vector.broadcast %15 : vector<1x128xf32> to vector<8x128xf32>
    %17 = arith.addf %14, %16 : vector<8x128xf32>
    %18 = math.tanh %17 : vector<8x128xf32>
    %c0_15 = arith.constant 0 : index
    %c0_16 = arith.constant 0 : index
    %19 = vector.load %arg8[%c0_15, %c0_16] : memref<128x128xf32, #tpu.memory_space<vmem>>, vector<128x128xf32>
    %cst_17 = arith.constant dense<0.000000e+00> : vector<8x128xf32>
    %20 = tpu.matmul %18, %19, %cst_17 {dimension_numbers = #tpu.dot_dimension_numbers<[1], [0], [0], [1], [0, 0, 1, 1], [], []>} : vector<8x128xf32>, vector<128x128xf32>, vector<8x128xf32> -> vector<8x128xf32>
    %c0_18 = arith.constant 0 : index
    %c0_19 = arith.constant 0 : index
    %21 = vector.load %arg9[%c0_18, %c0_19] : memref<1x128xf32, #tpu.memory_space<vmem>>, vector<1x128xf32>
    %22 = vector.broadcast %21 : vector<1x128xf32> to vector<8x128xf32>
    %23 = arith.addf %20, %22 : vector<8x128xf32>
    %24 = math.tanh %23 : vector<8x128xf32>
    %c0_20 = arith.constant 0 : index
    %c0_21 = arith.constant 0 : index
    %25 = vector.load %arg10[%c0_20, %c0_21] : memref<128x16xf32, #tpu.memory_space<vmem>>, vector<128x16xf32>
    %cst_22 = arith.constant dense<0.000000e+00> : vector<8x16xf32>
    %26 = tpu.matmul %24, %25, %cst_22 {dimension_numbers = #tpu.dot_dimension_numbers<[1], [0], [0], [1], [0, 0, 1, 1], [], []>} : vector<8x128xf32>, vector<128x16xf32>, vector<8x16xf32> -> vector<8x16xf32>
    %c0_23 = arith.constant 0 : index
    %c0_24 = arith.constant 0 : index
    %27 = vector.load %arg11[%c0_23, %c0_24] : memref<1x16xf32, #tpu.memory_space<vmem>>, vector<1x16xf32>
    %28 = vector.broadcast %27 : vector<1x16xf32> to vector<8x16xf32>
    %29 = arith.addf %26, %28 : vector<8x16xf32>
    %c0_25 = arith.constant 0 : index
    %c0_26 = arith.constant 0 : index
    %30 = vector.load %arg12[%c0_25, %c0_26] : memref<8x16xf32, #tpu.memory_space<vmem>>, vector<8x16xf32>
    tpu.vector_store %arg12[%c0_25, %c0_26], %29 {strides = array<i32>} : memref<8x16xf32, #tpu.memory_space<vmem>>, vector<8x16xf32>,
    return
  }
  func.func @transform_0(%arg0: i32) -> (i32, i32) {
    %c0_i32 = arith.constant 0 : i32
    %c0_i32_0 = arith.constant 0 : i32
    return %arg0, %c0_i32 : i32, i32
  }
  func.func @transform_1(%arg0: i32) -> (i32, i32) {
    %c0_i32 = arith.constant 0 : i32
    %c0_i32_0 = arith.constant 0 : i32
    %c0_i32_1 = arith.constant 0 : i32
    return %c0_i32, %c0_i32_0 : i32, i32
  }
  func.func @transform_2(%arg0: i32) -> (i32, i32) {
    %c0_i32 = arith.constant 0 : i32
    %c0_i32_0 = arith.constant 0 : i32
    %c0_i32_1 = arith.constant 0 : i32
    return %c0_i32, %c0_i32_0 : i32, i32
  }
  func.func @transform_3(%arg0: i32) -> (i32, i32) {
    %c0_i32 = arith.constant 0 : i32
    %c0_i32_0 = arith.constant 0 : i32
    %c0_i32_1 = arith.constant 0 : i32
    return %c0_i32, %c0_i32_0 : i32, i32
  }
  func.func @transform_4(%arg0: i32) -> (i32, i32) {
    %c0_i32 = arith.constant 0 : i32
    %c0_i32_0 = arith.constant 0 : i32
    %c0_i32_1 = arith.constant 0 : i32
    return %c0_i32, %c0_i32_0 : i32, i32
  }
  func.func @transform_5(%arg0: i32) -> (i32, i32) {
    %c0_i32 = arith.constant 0 : i32
    %c0_i32_0 = arith.constant 0 : i32
    %c0_i32_1 = arith.constant 0 : i32
    return %c0_i32, %c0_i32_0 : i32, i32
  }
  func.func @transform_6(%arg0: i32) -> (i32, i32) {
    %c0_i32 = arith.constant 0 : i32
    %c0_i32_0 = arith.constant 0 : i32
    %c0_i32_1 = arith.constant 0 : i32
    return %c0_i32, %c0_i32_0 : i32, i32
  }
  func.func @transform_7(%arg0: i32) -> (i32, i32) {
    %c0_i32 = arith.constant 0 : i32
    %c0_i32_0 = arith.constant 0 : i32
    %c0_i32_1 = arith.constant 0 : i32
    return %c0_i32, %c0_i32_0 : i32, i32
  }
  func.func @transform_8(%arg0: i32) -> (i32, i32) {
    %c0_i32 = arith.constant 0 : i32
    %c0_i32_0 = arith.constant 0 : i32
    %c0_i32_1 = arith.constant 0 : i32
    return %c0_i32, %c0_i32_0 : i32, i32
  }
  func.func @transform_9(%arg0: i32) -> (i32, i32) {
    %c0_i32 = arith.constant 0 : i32
    %c0_i32_0 = arith.constant 0 : i32
    %c0_i32_1 = arith.constant 0 : i32
    return %c0_i32, %c0_i32_0 : i32, i32
  }
  func.func @transform_10(%arg0: i32) -> (i32, i32) {
    %c0_i32 = arith.constant 0 : i32
    %c0_i32_0 = arith.constant 0 : i32
    %c0_i32_1 = arith.constant 0 : i32
    return %c0_i32, %c0_i32_0 : i32, i32
  }
  func.func @transform_11(%arg0: i32) -> (i32, i32) {
    %c0_i32 = arith.constant 0 : i32
    %c0_i32_0 = arith.constant 0 : i32
    return %arg0, %c0_i32 : i32, i32
  }
}

</mosaic_0001>

<llo_original>
// kernel: dataset_header_forward.1
$region0: #{dataset_header_forward.1}
  #allocation0 [shape = 'u32[]', space=smem, size = 0x4, offset = 0x4, fixed_abs, tag = 'smem constant byte address 0x4 - core index']
  #allocation1 [shape = 'u32[144,128]{1,0:T(1,128)}', space=vmem, size = 0x12000, scoped, tag = 'internal scratch']
  %s0 = inlined_call_operand.hbm [shape: f32[8,32], index: 0, kind: input, shape index: {}]
  %s1 = inlined_call_operand.vmem [shape: f32[32,128], index: 1, kind: input, shape index: {}]
  %s2 = inlined_call_operand.vmem [shape: f32[1,128], index: 2, kind: input, shape index: {}]
  %s3 = inlined_call_operand.vmem [shape: f32[128,128], index: 3, kind: input, shape index: {}]
  %s4 = inlined_call_operand.vmem [shape: f32[1,128], index: 4, kind: input, shape index: {}]
  %s5 = inlined_call_operand.hbm [shape: f32[128,128], index: 5, kind: input, shape index: {}]
  %s6 = inlined_call_operand.hbm [shape: f32[1,128], index: 6, kind: input, shape index: {}]
  %s7 = inlined_call_operand.hbm [shape: f32[128,128], index: 7, kind: input, shape index: {}]
  %s8 = inlined_call_operand.hbm [shape: f32[1,128], index: 8, kind: input, shape index: {}]
  %s9 = inlined_call_operand.vmem [shape: f32[128,16], index: 9, kind: input, shape index: {}]
  %s10 = inlined_call_operand.hbm [shape: f32[1,16], index: 10, kind: input, shape index: {}]
  %s11 = inlined_call_operand.hbm [shape: f32[8,16], index: 11, kind: output, shape index: {}]
  %s12 = sld [smem:[#allocation0]]
  $region78: #{dataset_header_forward.1} parent=0
    _
  %s14 = ssub.s32 1, %s12
  %s15 = scalar_select 0, %s14, %s12
  $region1: #{dataset_header_forward.1} parent=0
    #allocation2 [shape = 'u8[4096]{0}', space=vmem, size = 0x1000, scoped, tag = 'input window, operand 0, single buffered']
    #allocation3 [shape = 's32[1]{0}', space=sflag, size = 0x4, scoped, tag = 'scoped memory for dataset_header_forward.1']
    #allocation4 [shape = 's32[1]{0}', space=sflag, size = 0x4, scoped, tag = 'scoped memory for dataset_header_forward.1']
    #allocation5 [shape = 'u8[65536]{0}', space=vmem, size = 0x10000, scoped, tag = 'input window, operand 5, single buffered']
    #allocation6 [shape = 's32[1]{0}', space=sflag, size = 0x4, scoped, tag = 'scoped memory for dataset_header_forward.1']
    #allocation7 [shape = 'u8[512]{0}', space=vmem, size = 0x400, scoped, tag = 'input window, operand 6, single buffered']
    #allocation8 [shape = 'u8[65536]{0}', space=vmem, size = 0x10000, scoped, tag = 'input window, operand 7, single buffered']
    #allocation9 [shape = 's32[1]{0}', space=sflag, size = 0x4, scoped, tag = 'scoped memory for dataset_header_forward.1']
    #allocation10 [shape = 'u8[512]{0}', space=vmem, size = 0x400, scoped, tag = 'input window, operand 8, single buffered']
    #allocation11 [shape = 'u8[512]{0}', space=vmem, size = 0x400, scoped, tag = 'input window, operand 10, single buffered']
    #allocation12 [shape = 's32[1]{0}', space=sflag, size = 0x4, scoped, tag = 'scoped memory for dataset_header_forward.1']
    #allocation13 [shape = 'u8[4096]{0}', space=vmem, size = 0x1000, scoped, tag = 'output window, operand 0, single buffered']
    %16 = vsyncpa [#allocation3], 0
    %17 = vsyncpa [#allocation6], 0
    %18 = vsyncpa [#allocation9], 0
    %19 = vsyncpa [#allocation12], 0
    %20 = vsyncpa [#allocation4], 0
    // Predicated region
    $region2: #{dataset_header_forward.1} parent=1 // pred_check
      _
    $region3: #{dataset_header_forward.1} parent=1 // pred_check_branch
      %22 = sbr.rel (0) target = $region5
    $region4: #{dataset_header_forward.1} parent=1 // pred_region
      %s24 = ssub.s32 128, 128
      %25 = vsyncadd [#allocation3], %s24
      %s27 = sshll.u32 [#allocation2], 4
      %s28 = int_to_ptr.vmem [resolvable:$true] %s27
      %30 = dma.hbm_to_vmem [thread:$0]  %s0, 128, %s28, [#allocation3]
    $region5: #{dataset_header_forward.1} parent=1 // pred_fallthru
      _
    // Predicated region
    $region6: #{dataset_header_forward.1} parent=1 // pred_check
      _
    $region7: #{dataset_header_forward.1} parent=1 // pred_check_branch
      %32 = sbr.rel (0) target = $region9
    $region8: #{dataset_header_forward.1} parent=1 // pred_region
      _
    $region9: #{dataset_header_forward.1} parent=1 // pred_fallthru
      _
    // Predicated region
    $region10: #{dataset_header_forward.1} parent=1 // pred_check
      _
    $region11: #{dataset_header_forward.1} parent=1 // pred_check_branch
      %34 = sbr.rel (0) target = $region13
    $region12: #{dataset_header_forward.1} parent=1 // pred_region
      _
    $region13: #{dataset_header_forward.1} parent=1 // pred_fallthru
      _
    // Predicated region
    $region14: #{dataset_header_forward.1} parent=1 // pred_check
      _
    $region15: #{dataset_header_forward.1} parent=1 // pred_check_branch
      %36 = sbr.rel (0) target = $region17
    $region16: #{dataset_header_forward.1} parent=1 // pred_region
      _
    $region17: #{dataset_header_forward.1} parent=1 // pred_fallthru
      _
    // Predicated region
    $region18: #{dataset_header_forward.1} parent=1 // pred_check
      _
    $region19: #{dataset_header_forward.1} parent=1 // pred_check_branch
      %38 = sbr.rel (0) target = $region21
    $region20: #{dataset_header_forward.1} parent=1 // pred_region
      _
    $region21: #{dataset_header_forward.1} parent=1 // pred_fallthru
      _
    // Predicated region
    $region22: #{dataset_header_forward.1} parent=1 // pred_check
      _
    $region23: #{dataset_header_forward.1} parent=1 // pred_check_branch
      %40 = sbr.rel (0) target = $region25
    $region24: #{dataset_header_forward.1} parent=1 // pred_region
      %s42 = ssub.s32 2048, 2048
      %43 = vsyncadd [#allocation6], %s42
      %s44 = sshll.u32 [#allocation5], 4
      %s45 = int_to_ptr.vmem [resolvable:$true] %s44
      %50 = dma.hbm_to_vmem [thread:$0]  %s5, 2048, %s45, [#allocation6], 128, 128, 8
    $region25: #{dataset_header_forward.1} parent=1 // pred_fallthru
      _
    // Predicated region
    $region26: #{dataset_header_forward.1} parent=1 // pred_check
      _
    $region27: #{dataset_header_forward.1} parent=1 // pred_check_branch
      %52 = sbr.rel (0) target = $region29
    $region28: #{dataset_header_forward.1} parent=1 // pred_region
      %s54 = ssub.s32 16, 16
      %55 = vsyncadd [#allocation6], %s54
      %s57 = sshll.u32 [#allocation7], 4
      %s58 = int_to_ptr.vmem [resolvable:$true] %s57
      %60 = dma.hbm_to_vmem [thread:$0]  %s6, 16, %s58, [#allocation6]
    $region29: #{dataset_header_forward.1} parent=1 // pred_fallthru
      _
    // Predicated region
    $region30: #{dataset_header_forward.1} parent=1 // pred_check
      _
    $region31: #{dataset_header_forward.1} parent=1 // pred_check_branch
      %62 = sbr.rel (0) target = $region33
    $region32: #{dataset_header_forward.1} parent=1 // pred_region
      %s64 = ssub.s32 2048, 2048
      %65 = vsyncadd [#allocation9], %s64
      %s66 = sshll.u32 [#allocation8], 4
      %s67 = int_to_ptr.vmem [resolvable:$true] %s66
      %72 = dma.hbm_to_vmem [thread:$0]  %s7, 2048, %s67, [#allocation9], 128, 128, 8
    $region33: #{dataset_header_forward.1} parent=1 // pred_fallthru
      _
    // Predicated region
    $region34: #{dataset_header_forward.1} parent=1 // pred_check
      _
    $region35: #{dataset_header_forward.1} parent=1 // pred_check_branch
      %74 = sbr.rel (0) target = $region37
    $region36: #{dataset_header_forward.1} parent=1 // pred_region
      %s76 = ssub.s32 16, 16
      %77 = vsyncadd [#allocation9], %s76
      %s79 = sshll.u32 [#allocation10], 4
      %s80 = int_to_ptr.vmem [resolvable:$true] %s79
      %82 = dma.hbm_to_vmem [thread:$0]  %s8, 16, %s80, [#allocation9]
    $region37: #{dataset_header_forward.1} parent=1 // pred_fallthru
      _
    // Predicated region
    $region38: #{dataset_header_forward.1} parent=1 // pred_check
      _
    $region39: #{dataset_header_forward.1} parent=1 // pred_check_branch
      %84 = sbr.rel (0) target = $region41
    $region40: #{dataset_header_forward.1} parent=1 // pred_region
      _
    $region41: #{dataset_header_forward.1} parent=1 // pred_fallthru
      _
    // Predicated region
    $region42: #{dataset_header_forward.1} parent=1 // pred_check
      _
    $region43: #{dataset_header_forward.1} parent=1 // pred_check_branch
      %86 = sbr.rel (0) target = $region45
    $region44: #{dataset_header_forward.1} parent=1 // pred_region
      %s88 = ssub.s32 16, 16
      %89 = vsyncadd [#allocation12], %s88
      %s91 = sshll.u32 [#allocation11], 4
      %s92 = int_to_ptr.vmem [resolvable:$true] %s91
      %94 = dma.hbm_to_vmem [thread:$0]  %s10, 16, %s92, [#allocation12]
    $region45: #{dataset_header_forward.1} parent=1 // pred_fallthru
      _
    // Predicated region
    $region46: #{dataset_header_forward.1} parent=1 // pred_check
      _
    $region47: #{dataset_header_forward.1} parent=1 // pred_check_branch
      %96 = sbr.rel (0) target = $region49
    $region48: #{dataset_header_forward.1} parent=1 // pred_region
      %97 = dma.done [#allocation3], 128
    $region49: #{dataset_header_forward.1} parent=1 // pred_fallthru
      _
    // Predicated region
    $region50: #{dataset_header_forward.1} parent=1 // pred_check
      _
    $region51: #{dataset_header_forward.1} parent=1 // pred_check_branch
      %99 = sbr.rel (0) target = $region53
    $region52: #{dataset_header_forward.1} parent=1 // pred_region
      %100 = dma.done [#allocation6], 2048
    $region53: #{dataset_header_forward.1} parent=1 // pred_fallthru
      _
    // Predicated region
    $region54: #{dataset_header_forward.1} parent=1 // pred_check
      _
    $region55: #{dataset_header_forward.1} parent=1 // pred_check_branch
      %102 = sbr.rel (0) target = $region57
    $region56: #{dataset_header_forward.1} parent=1 // pred_region
      %103 = dma.done [#allocation6], 16
    $region57: #{dataset_header_forward.1} parent=1 // pred_fallthru
      _
    // Predicated region
    $region58: #{dataset_header_forward.1} parent=1 // pred_check
      _
    $region59: #{dataset_header_forward.1} parent=1 // pred_check_branch
      %105 = sbr.rel (0) target = $region61
    $region60: #{dataset_header_forward.1} parent=1 // pred_region
      %106 = dma.done [#allocation9], 2048
    $region61: #{dataset_header_forward.1} parent=1 // pred_fallthru
      _
    // Predicated region
    $region62: #{dataset_header_forward.1} parent=1 // pred_check
      _
    $region63: #{dataset_header_forward.1} parent=1 // pred_check_branch
      %108 = sbr.rel (0) target = $region65
    $region64: #{dataset_header_forward.1} parent=1 // pred_region
      %109 = dma.done [#allocation9], 16
    $region65: #{dataset_header_forward.1} parent=1 // pred_fallthru
      _
    // Predicated region
    $region66: #{dataset_header_forward.1} parent=1 // pred_check
      _
    $region67: #{dataset_header_forward.1} parent=1 // pred_check_branch
      %111 = sbr.rel (0) target = $region69
    $region68: #{dataset_header_forward.1} parent=1 // pred_region
      %112 = dma.done [#allocation12], 16
    $region69: #{dataset_header_forward.1} parent=1 // pred_fallthru
      _
    %v113 = vld [vmem:[#allocation2] sm:$0xff]
    %v114 = vld [vmem:[%s1] sm:$0xff]
    %v115 = vld [vmem:[%s1 + $0x8] sm:$0xff]
    %v116 = vld [vmem:[%s1 + $0x10] sm:$0xff]
    %v117 = vld [vmem:[%s1 + $0x18] sm:$0xff]
    %v118 = vld [vmem:[%s2] sm:$0x1]
    %v120 = vlaneseq
    %v121 = vshrl.u32 %v120, 7
    %v122 = vsub.s32 0, %v121
    %v123 = vrot.slane %v118, %v122
    %vm125 = vcmask 261120
    %v127 = vsel %vm125, %v113, 0
    %129 = vmatprep.subr.mxu0 0.0
    %130 = vmatpush1.msra.mxu0 %v114
    %131 = vmatprep.subr.mxu0 0.0
    %132 = vmatpush1.msra.mxu0 %v115
    %133 = vmatprep.subr.mxu0 0.0
    %134 = vmatpush1.msra.mxu0 %v116
    %135 = vmatprep.subr.mxu0 0.0
    %136 = vmatpush1.msra.mxu0 %v117
    %137 = vmatprep.subr.mxu0 0.0
    %138 = vmatpush1.msra.mxu0 0.0
    %139 = vmatprep.subr.mxu0 0.0
    %140 = vmatpush1.msra.mxu0 0.0
    %141 = vmatprep.subr.mxu0 0.0
    %142 = vmatpush1.msra.mxu0 0.0
    %143 = vmatprep.subr.mxu0 0.0
    %144 = vmatpush1.msra.mxu0 0.0
    %145 = vmatprep.subr.mxu0 0.0
    %146 = vmatpush1.msra.mxu0 0.0
    %147 = vmatprep.subr.mxu0 0.0
    %148 = vmatpush1.msra.mxu0 0.0
    %149 = vmatprep.subr.mxu0 0.0
    %150 = vmatpush1.msra.mxu0 0.0
    %151 = vmatprep.subr.mxu0 0.0
    %152 = vmatpush1.msra.mxu0 0.0
    %153 = vmatprep.subr.mxu0 0.0
    %154 = vmatpush1.msra.mxu0 0.0
    %155 = vmatprep.subr.mxu0 0.0
    %156 = vmatpush1.msra.mxu0 0.0
    %157 = vmatprep.subr.mxu0 0.0
    %158 = vmatpush1.msra.mxu0 0.0
    %159 = vmatprep.subr.mxu0 0.0
    %160 = vmatpush1.msra.mxu0 0.0
    %161 = vmatprep.subr.mxu0 0.0
    %162 = vmatpush1.msra.mxu0 0.0
    %163 = vmatprep.subr.mxu0 0.0
    %164 = vmatpush1.msra.mxu0 0.0
    %165 = vmatprep.subr.mxu0 0.0
    %166 = vmatpush1.msra.mxu0 0.0
    %167 = vmatprep.subr.mxu0 0.0
    %168 = vmatpush1.msra.mxu0 0.0
    %169 = vmatprep.subr.mxu0 0.0
    %170 = vmatpush1.msra.mxu0 0.0
    %171 = vmatprep.subr.mxu0 0.0
    %172 = vmatpush1.msra.mxu0 0.0
    %173 = vmatprep.subr.mxu0 0.0
    %174 = vmatpush1.msra.mxu0 0.0
    %175 = vmatprep.subr.mxu0 0.0
    %176 = vmatpush1.msra.mxu0 0.0
    %177 = vmatprep.subr.mxu0 0.0
    %178 = vmatpush1.msra.mxu0 0.0
    %179 = vmatprep.subr.mxu0 0.0
    %180 = vmatpush1.msra.mxu0 0.0
    %181 = vmatprep.subr.mxu0 0.0
    %182 = vmatpush1.msra.mxu0 0.0
    %183 = vmatprep.subr.mxu0 0.0
    %184 = vmatpush1.msra.mxu0 0.0
    %185 = vmatprep.subr.mxu0 0.0
    %186 = vmatpush1.msra.mxu0 0.0
    %187 = vmatprep.subr.mxu0 0.0
    %188 = vmatpush1.msra.mxu0 0.0
    %189 = vmatprep.subr.mxu0 0.0
    %190 = vmatpush1.msra.mxu0 0.0
    %191 = vmatprep.subr.mxu0 0.0
    %192 = vmatpush1.msra.mxu0 0.0
    %193 = vmatprep.mubr.f32.mxu0 0.0
    %194 = vmatmul.mubr.f32.gmra.mrb[0].mxu0 %v127
    %v195 = vpop.f32.mrb[0].mxu0
    %v196 = vadd.f32 %v123, %v195
    %v197 = vpop.f32.mrb[0].mxu0
    %198 = vdwg.mxu0
    %v199 = vtanh.pop %v196
    %v200 = vld [vmem:[%s3] sm:$0xff]
    %v201 = vld [vmem:[%s3 + $0x8] sm:$0xff]
    %v202 = vld [vmem:[%s3 + $0x10] sm:$0xff]
    %v203 = vld [vmem:[%s3 + $0x18] sm:$0xff]
    %v204 = vld [vmem:[%s3 + $0x20] sm:$0xff]
    %v205 = vld [vmem:[%s3 + $0x28] sm:$0xff]
    %v206 = vld [vmem:[%s3 + $0x30] sm:$0xff]
    %v207 = vld [vmem:[%s3 + $0x38] sm:$0xff]
    %v208 = vld [vmem:[%s3 + $0x40] sm:$0xff]
    %v209 = vld [vmem:[%s3 + $0x48] sm:$0xff]
    %v210 = vld [vmem:[%s3 + $0x50] sm:$0xff]
    %v211 = vld [vmem:[%s3 + $0x58] sm:$0xff]
    %v212 = vld [vmem:[%s3 + $0x60] sm:$0xff]
    %v213 = vld [vmem:[%s3 + $0x68] sm:$0xff]
    %v214 = vld [vmem:[%s3 + $0x70] sm:$0xff]
    %v215 = vld [vmem:[%s3 + $0x78] sm:$0xff]
    %v216 = vld [vmem:[%s4] sm:$0x1]
    %v218 = vlaneseq
    %v219 = vshrl.u32 %v218, 7
    %v220 = vsub.s32 0, %v219
    %v221 = vrot.slane %v216, %v220
    %223 = vmatprep.subr.mxu0 0.0
    %224 = vmatpush1.msra.mxu0 %v200
    %225 = vmatprep.subr.mxu0 0.0
    %226 = vmatpush1.msra.mxu0 %v201
    %227 = vmatprep.subr.mxu0 0.0
    %228 = vmatpush1.msra.mxu0 %v202
    %229 = vmatprep.subr.mxu0 0.0
    %230 = vmatpush1.msra.mxu0 %v203
    %231 = vmatprep.subr.mxu0 0.0
    %232 = vmatpush1.msra.mxu0 %v204
    %233 = vmatprep.subr.mxu0 0.0
    %234 = vmatpush1.msra.mxu0 %v205
    %235 = vmatprep.subr.mxu0 0.0
    %236 = vmatpush1.msra.mxu0 %v206
    %237 = vmatprep.subr.mxu0 0.0
    %238 = vmatpush1.msra.mxu0 %v207
    %239 = vmatprep.subr.mxu0 0.0
    %240 = vmatpush1.msra.mxu0 %v208
    %241 = vmatprep.subr.mxu0 0.0
    %242 = vmatpush1.msra.mxu0 %v209
    %243 = vmatprep.subr.mxu0 0.0
    %244 = vmatpush1.msra.mxu0 %v210
    %245 = vmatprep.subr.mxu0 0.0
    %246 = vmatpush1.msra.mxu0 %v211
    %247 = vmatprep.subr.mxu0 0.0
    %248 = vmatpush1.msra.mxu0 %v212
    %249 = vmatprep.subr.mxu0 0.0
    %250 = vmatpush1.msra.mxu0 %v213
    %251 = vmatprep.subr.mxu0 0.0
    %252 = vmatpush1.msra.mxu0 %v214
    %253 = vmatprep.subr.mxu0 0.0
    %254 = vmatpush1.msra.mxu0 %v215
    %255 = vmatprep.subr.mxu0 0.0
    %256 = vmatpush1.msra.mxu0 0.0
    %257 = vmatprep.subr.mxu0 0.0
    %258 = vmatpush1.msra.mxu0 0.0
    %259 = vmatprep.subr.mxu0 0.0
    %260 = vmatpush1.msra.mxu0 0.0
    %261 = vmatprep.subr.mxu0 0.0
    %262 = vmatpush1.msra.mxu0 0.0
    %263 = vmatprep.subr.mxu0 0.0
    %264 = vmatpush1.msra.mxu0 0.0
    %265 = vmatprep.subr.mxu0 0.0
    %266 = vmatpush1.msra.mxu0 0.0
    %267 = vmatprep.subr.mxu0 0.0
    %268 = vmatpush1.msra.mxu0 0.0
    %269 = vmatprep.subr.mxu0 0.0
    %270 = vmatpush1.msra.mxu0 0.0
    %271 = vmatprep.subr.mxu0 0.0
    %272 = vmatpush1.msra.mxu0 0.0
    %273 = vmatprep.subr.mxu0 0.0
    %274 = vmatpush1.msra.mxu0 0.0
    %275 = vmatprep.subr.mxu0 0.0
    %276 = vmatpush1.msra.mxu0 0.0
    %277 = vmatprep.subr.mxu0 0.0
    %278 = vmatpush1.msra.mxu0 0.0
    %279 = vmatprep.subr.mxu0 0.0
    %280 = vmatpush1.msra.mxu0 0.0
    %281 = vmatprep.subr.mxu0 0.0
    %282 = vmatpush1.msra.mxu0 0.0
    %283 = vmatprep.subr.mxu0 0.0
    %284 = vmatpush1.msra.mxu0 0.0
    %285 = vmatprep.subr.mxu0 0.0
    %286 = vmatpush1.msra.mxu0 0.0
    %287 = vmatprep.mubr.f32.mxu0 0.0
    %288 = vmatmul.mubr.f32.gmra.mrb[0].mxu0 %v199
    %v289 = vpop.f32.mrb[0].mxu0
    %v290 = vadd.f32 %v221, %v289
    %v291 = vpop.f32.mrb[0].mxu0
    %292 = vdwg.mxu0
    %v293 = vtanh.pop %v290
    %v294 = vld [vmem:[#allocation5] sm:$0xff]
    %v295 = vld [vmem:[#allocation5 + $0x8] sm:$0xff]
    %v296 = vld [vmem:[#allocation5 + $0x10] sm:$0xff]
    %v297 = vld [vmem:[#allocation5 + $0x18] sm:$0xff]
    %v298 = vld [vmem:[#allocation5 + $0x20] sm:$0xff]
    %v299 = vld [vmem:[#allocation5 + $0x28] sm:$0xff]
    %v300 = vld [vmem:[#allocation5 + $0x30] sm:$0xff]
    %v301 = vld [vmem:[#allocation5 + $0x38] sm:$0xff]
    %v302 = vld [vmem:[#allocation5 + $0x40] sm:$0xff]
    %v303 = vld [vmem:[#allocation5 + $0x48] sm:$0xff]
    %v304 = vld [vmem:[#allocation5 + $0x50] sm:$0xff]
    %v305 = vld [vmem:[#allocation5 + $0x58] sm:$0xff]
    %v306 = vld [vmem:[#allocation5 + $0x60] sm:$0xff]
    %v307 = vld [vmem:[#allocation5 + $0x68] sm:$0xff]
    %v308 = vld [vmem:[#allocation5 + $0x70] sm:$0xff]
    %v309 = vld [vmem:[#allocation5 + $0x78] sm:$0xff]
    %v310 = vld [vmem:[#allocation7] sm:$0x1]
    %v312 = vlaneseq
    %v313 = vshrl.u32 %v312, 7
    %v314 = vsub.s32 0, %v313
    %v315 = vrot.slane %v310, %v314
    %317 = vmatprep.subr.mxu0 0.0
    %318 = vmatpush1.msra.mxu0 %v294
    %319 = vmatprep.subr.mxu0 0.0
    %320 = vmatpush1.msra.mxu0 %v295
    %321 = vmatprep.subr.mxu0 0.0
    %322 = vmatpush1.msra.mxu0 %v296
    %323 = vmatprep.subr.mxu0 0.0
    %324 = vmatpush1.msra.mxu0 %v297
    %325 = vmatprep.subr.mxu0 0.0
    %326 = vmatpush1.msra.mxu0 %v298
    %327 = vmatprep.subr.mxu0 0.0
    %328 = vmatpush1.msra.mxu0 %v299
    %329 = vmatprep.subr.mxu0 0.0
    %330 = vmatpush1.msra.mxu0 %v300
    %331 = vmatprep.subr.mxu0 0.0
    %332 = vmatpush1.msra.mxu0 %v301
    %333 = vmatprep.subr.mxu0 0.0
    %334 = vmatpush1.msra.mxu0 %v302
    %335 = vmatprep.subr.mxu0 0.0
    %336 = vmatpush1.msra.mxu0 %v303
    %337 = vmatprep.subr.mxu0 0.0
    %338 = vmatpush1.msra.mxu0 %v304
    %339 = vmatprep.subr.mxu0 0.0
    %340 = vmatpush1.msra.mxu0 %v305
    %341 = vmatprep.subr.mxu0 0.0
    %342 = vmatpush1.msra.mxu0 %v306
    %343 = vmatprep.subr.mxu0 0.0
    %344 = vmatpush1.msra.mxu0 %v307
    %345 = vmatprep.subr.mxu0 0.0
    %346 = vmatpush1.msra.mxu0 %v308
    %347 = vmatprep.subr.mxu0 0.0
    %348 = vmatpush1.msra.mxu0 %v309
    %349 = vmatprep.subr.mxu0 0.0
    %350 = vmatpush1.msra.mxu0 0.0
    %351 = vmatprep.subr.mxu0 0.0
    %352 = vmatpush1.msra.mxu0 0.0
    %353 = vmatprep.subr.mxu0 0.0
    %354 = vmatpush1.msra.mxu0 0.0
    %355 = vmatprep.subr.mxu0 0.0
    %356 = vmatpush1.msra.mxu0 0.0
    %357 = vmatprep.subr.mxu0 0.0
    %358 = vmatpush1.msra.mxu0 0.0
    %359 = vmatprep.subr.mxu0 0.0
    %360 = vmatpush1.msra.mxu0 0.0
    %361 = vmatprep.subr.mxu0 0.0
    %362 = vmatpush1.msra.mxu0 0.0
    %363 = vmatprep.subr.mxu0 0.0
    %364 = vmatpush1.msra.mxu0 0.0
    %365 = vmatprep.subr.mxu0 0.0
    %366 = vmatpush1.msra.mxu0 0.0
    %367 = vmatprep.subr.mxu0 0.0
    %368 = vmatpush1.msra.mxu0 0.0
    %369 = vmatprep.subr.mxu0 0.0
    %370 = vmatpush1.msra.mxu0 0.0
    %371 = vmatprep.subr.mxu0 0.0
    %372 = vmatpush1.msra.mxu0 0.0
    %373 = vmatprep.subr.mxu0 0.0
    %374 = vmatpush1.msra.mxu0 0.0
    %375 = vmatprep.subr.mxu0 0.0
    %376 = vmatpush1.msra.mxu0 0.0
    %377 = vmatprep.subr.mxu0 0.0
    %378 = vmatpush1.msra.mxu0 0.0
    %379 = vmatprep.subr.mxu0 0.0
    %380 = vmatpush1.msra.mxu0 0.0
    %381 = vmatprep.mubr.f32.mxu0 0.0
    %382 = vmatmul.mubr.f32.gmra.mrb[0].mxu0 %v293
    %v383 = vpop.f32.mrb[0].mxu0
    %v384 = vadd.f32 %v315, %v383
    %v385 = vpop.f32.mrb[0].mxu0
    %386 = vdwg.mxu0
    %v387 = vtanh.pop %v384
    %v388 = vld [vmem:[#allocation8] sm:$0xff]
    %v389 = vld [vmem:[#allocation8 + $0x8] sm:$0xff]
    %v390 = vld [vmem:[#allocation8 + $0x10] sm:$0xff]
    %v391 = vld [vmem:[#allocation8 + $0x18] sm:$0xff]
    %v392 = vld [vmem:[#allocation8 + $0x20] sm:$0xff]
    %v393 = vld [vmem:[#allocation8 + $0x28] sm:$0xff]
    %v394 = vld [vmem:[#allocation8 + $0x30] sm:$0xff]
    %v395 = vld [vmem:[#allocation8 + $0x38] sm:$0xff]
    %v396 = vld [vmem:[#allocation8 + $0x40] sm:$0xff]
    %v397 = vld [vmem:[#allocation8 + $0x48] sm:$0xff]
    %v398 = vld [vmem:[#allocation8 + $0x50] sm:$0xff]
    %v399 = vld [vmem:[#allocation8 + $0x58] sm:$0xff]
    %v400 = vld [vmem:[#allocation8 + $0x60] sm:$0xff]
    %v401 = vld [vmem:[#allocation8 + $0x68] sm:$0xff]
    %v402 = vld [vmem:[#allocation8 + $0x70] sm:$0xff]
    %v403 = vld [vmem:[#allocation8 + $0x78] sm:$0xff]
    %v404 = vld [vmem:[#allocation10] sm:$0x1]
    %v406 = vlaneseq
    %v407 = vshrl.u32 %v406, 7
    %v408 = vsub.s32 0, %v407
    %v409 = vrot.slane %v404, %v408
    %411 = vmatprep.subr.mxu0 0.0
    %412 = vmatpush1.msra.mxu0 %v388
    %413 = vmatprep.subr.mxu0 0.0
    %414 = vmatpush1.msra.mxu0 %v389
    %415 = vmatprep.subr.mxu0 0.0
    %416 = vmatpush1.msra.mxu0 %v390
    %417 = vmatprep.subr.mxu0 0.0
    %418 = vmatpush1.msra.mxu0 %v391
    %419 = vmatprep.subr.mxu0 0.0
    %420 = vmatpush1.msra.mxu0 %v392
    %421 = vmatprep.subr.mxu0 0.0
    %422 = vmatpush1.msra.mxu0 %v393
    %423 = vmatprep.subr.mxu0 0.0
    %424 = vmatpush1.msra.mxu0 %v394
    %425 = vmatprep.subr.mxu0 0.0
    %426 = vmatpush1.msra.mxu0 %v395
    %427 = vmatprep.subr.mxu0 0.0
    %428 = vmatpush1.msra.mxu0 %v396
    %429 = vmatprep.subr.mxu0 0.0
    %430 = vmatpush1.msra.mxu0 %v397
    %431 = vmatprep.subr.mxu0 0.0
    %432 = vmatpush1.msra.mxu0 %v398
    %433 = vmatprep.subr.mxu0 0.0
    %434 = vmatpush1.msra.mxu0 %v399
    %435 = vmatprep.subr.mxu0 0.0
    %436 = vmatpush1.msra.mxu0 %v400
    %437 = vmatprep.subr.mxu0 0.0
    %438 = vmatpush1.msra.mxu0 %v401
    %439 = vmatprep.subr.mxu0 0.0
    %440 = vmatpush1.msra.mxu0 %v402
    %441 = vmatprep.subr.mxu0 0.0
    %442 = vmatpush1.msra.mxu0 %v403
    %443 = vmatprep.subr.mxu0 0.0
    %444 = vmatpush1.msra.mxu0 0.0
    %445 = vmatprep.subr.mxu0 0.0
    %446 = vmatpush1.msra.mxu0 0.0
    %447 = vmatprep.subr.mxu0 0.0
    %448 = vmatpush1.msra.mxu0 0.0
    %449 = vmatprep.subr.mxu0 0.0
    %450 = vmatpush1.msra.mxu0 0.0
    %451 = vmatprep.subr.mxu0 0.0
    %452 = vmatpush1.msra.mxu0 0.0
    %453 = vmatprep.subr.mxu0 0.0
    %454 = vmatpush1.msra.mxu0 0.0
    %455 = vmatprep.subr.mxu0 0.0
    %456 = vmatpush1.msra.mxu0 0.0
    %457 = vmatprep.subr.mxu0 0.0
    %458 = vmatpush1.msra.mxu0 0.0
    %459 = vmatprep.subr.mxu0 0.0
    %460 = vmatpush1.msra.mxu0 0.0
    %461 = vmatprep.subr.mxu0 0.0
    %462 = vmatpush1.msra.mxu0 0.0
    %463 = vmatprep.subr.mxu0 0.0
    %464 = vmatpush1.msra.mxu0 0.0
    %465 = vmatprep.subr.mxu0 0.0
    %466 = vmatpush1.msra.mxu0 0.0
    %467 = vmatprep.subr.mxu0 0.0
    %468 = vmatpush1.msra.mxu0 0.0
    %469 = vmatprep.subr.mxu0 0.0
    %470 = vmatpush1.msra.mxu0 0.0
    %471 = vmatprep.subr.mxu0 0.0
    %472 = vmatpush1.msra.mxu0 0.0
    %473 = vmatprep.subr.mxu0 0.0
    %474 = vmatpush1.msra.mxu0 0.0
    %475 = vmatprep.mubr.f32.mxu0 0.0
    %476 = vmatmul.mubr.f32.gmra.mrb[0].mxu0 %v387
    %v477 = vpop.f32.mrb[0].mxu0
    %v478 = vadd.f32 %v409, %v477
    %v479 = vpop.f32.mrb[0].mxu0
    %480 = vdwg.mxu0
    %v481 = vtanh.pop %v478
    %v482 = vld [vmem:[%s9] sm:$0xff]
    %v483 = vld [vmem:[%s9 + $0x8] sm:$0xff]
    %v484 = vld [vmem:[%s9 + $0x10] sm:$0xff]
    %v485 = vld [vmem:[%s9 + $0x18] sm:$0xff]
    %v486 = vld [vmem:[%s9 + $0x20] sm:$0xff]
    %v487 = vld [vmem:[%s9 + $0x28] sm:$0xff]
    %v488 = vld [vmem:[%s9 + $0x30] sm:$0xff]
    %v489 = vld [vmem:[%s9 + $0x38] sm:$0xff]
    %v490 = vld [vmem:[%s9 + $0x40] sm:$0xff]
    %v491 = vld [vmem:[%s9 + $0x48] sm:$0xff]
    %v492 = vld [vmem:[%s9 + $0x50] sm:$0xff]
    %v493 = vld [vmem:[%s9 + $0x58] sm:$0xff]
    %v494 = vld [vmem:[%s9 + $0x60] sm:$0xff]
    %v495 = vld [vmem:[%s9 + $0x68] sm:$0xff]
    %v496 = vld [vmem:[%s9 + $0x70] sm:$0xff]
    %v497 = vld [vmem:[%s9 + $0x78] sm:$0xff]
    %v498 = vld [vmem:[#allocation11] sm:$0x1]
    %v500 = vlaneseq
    %v501 = vshrl.u32 %v500, 7
    %v502 = vsub.s32 0, %v501
    %v503 = vrot.slane %v498, %v502
    %505 = vmatprep.subr.mxu0 0.0
    %506 = vmatpush1.msra.mxu0 %v482
    %507 = vmatprep.subr.mxu0 0.0
    %508 = vmatpush1.msra.mxu0 %v483
    %509 = vmatprep.subr.mxu0 0.0
    %510 = vmatpush1.msra.mxu0 %v484
    %511 = vmatprep.subr.mxu0 0.0
    %512 = vmatpush1.msra.mxu0 %v485
    %513 = vmatprep.subr.mxu0 0.0
    %514 = vmatpush1.msra.mxu0 %v486
    %515 = vmatprep.subr.mxu0 0.0
    %516 = vmatpush1.msra.mxu0 %v487
    %517 = vmatprep.subr.mxu0 0.0
    %518 = vmatpush1.msra.mxu0 %v488
    %519 = vmatprep.subr.mxu0 0.0
    %520 = vmatpush1.msra.mxu0 %v489
    %521 = vmatprep.subr.mxu0 0.0
    %522 = vmatpush1.msra.mxu0 %v490
    %523 = vmatprep.subr.mxu0 0.0
    %524 = vmatpush1.msra.mxu0 %v491
    %525 = vmatprep.subr.mxu0 0.0
    %526 = vmatpush1.msra.mxu0 %v492
    %527 = vmatprep.subr.mxu0 0.0
    %528 = vmatpush1.msra.mxu0 %v493
    %529 = vmatprep.subr.mxu0 0.0
    %530 = vmatpush1.msra.mxu0 %v494
    %531 = vmatprep.subr.mxu0 0.0
    %532 = vmatpush1.msra.mxu0 %v495
    %533 = vmatprep.subr.mxu0 0.0
    %534 = vmatpush1.msra.mxu0 %v496
    %535 = vmatprep.subr.mxu0 0.0
    %536 = vmatpush1.msra.mxu0 %v497
    %537 = vmatprep.subr.mxu0 0.0
    %538 = vmatpush1.msra.mxu0 0.0
    %539 = vmatprep.subr.mxu0 0.0
    %540 = vmatpush1.msra.mxu0 0.0
    %541 = vmatprep.subr.mxu0 0.0
    %542 = vmatpush1.msra.mxu0 0.0
    %543 = vmatprep.subr.mxu0 0.0
    %544 = vmatpush1.msra.mxu0 0.0
    %545 = vmatprep.subr.mxu0 0.0
    %546 = vmatpush1.msra.mxu0 0.0
    %547 = vmatprep.subr.mxu0 0.0
    %548 = vmatpush1.msra.mxu0 0.0
    %549 = vmatprep.subr.mxu0 0.0
    %550 = vmatpush1.msra.mxu0 0.0
    %551 = vmatprep.subr.mxu0 0.0
    %552 = vmatpush1.msra.mxu0 0.0
    %553 = vmatprep.subr.mxu0 0.0
    %554 = vmatpush1.msra.mxu0 0.0
    %555 = vmatprep.subr.mxu0 0.0
    %556 = vmatpush1.msra.mxu0 0.0
    %557 = vmatprep.subr.mxu0 0.0
    %558 = vmatpush1.msra.mxu0 0.0
    %559 = vmatprep.subr.mxu0 0.0
    %560 = vmatpush1.msra.mxu0 0.0
    %561 = vmatprep.subr.mxu0 0.0
    %562 = vmatpush1.msra.mxu0 0.0
    %563 = vmatprep.subr.mxu0 0.0
    %564 = vmatpush1.msra.mxu0 0.0
    %565 = vmatprep.subr.mxu0 0.0
    %566 = vmatpush1.msra.mxu0 0.0
    %567 = vmatprep.subr.mxu0 0.0
    %568 = vmatpush1.msra.mxu0 0.0
    %569 = vmatprep.mubr.f32.mxu0 0.0
    %570 = vmatmul.mubr.f32.gmra.mrb[0].mxu0 %v481
    %v571 = vpop.f32.mrb[0].mxu0
    %v572 = vadd.f32 %v503, %v571
    %v573 = vpop.f32.mrb[0].mxu0
    %574 = vdwg.mxu0
    %vm575 = vcmask 130048
    %576 = vst.msk [vmem:[#allocation13] sm:$0xff] %vm575, %v572
    // Predicated region
    $region70: #{dataset_header_forward.1} parent=1 // pred_check
      _
    $region71: #{dataset_header_forward.1} parent=1 // pred_check_branch
      %578 = sbr.rel (0) target = $region73
    $region72: #{dataset_header_forward.1} parent=1 // pred_region
      %s580 = ssub.s32 128, 128
      %581 = vsyncadd [#allocation4], %s580
      %s583 = sshll.u32 [#allocation13], 4
      %s584 = int_to_ptr.vmem [resolvable:$true] %s583
      %586 = dma.vmem_to_hbm [thread:$0]  %s584, 128, %s11, [#allocation4]
    $region73: #{dataset_header_forward.1} parent=1 // pred_fallthru
      _
    // Predicated region
    $region74: #{dataset_header_forward.1} parent=1 // pred_check
      _
    $region75: #{dataset_header_forward.1} parent=1 // pred_check_branch
      %588 = sbr.rel (0) target = $region77
    $region76: #{dataset_header_forward.1} parent=1 // pred_region
      %589 = dma.done [#allocation4], 128
    $region77: #{dataset_header_forward.1} parent=1 // pred_fallthru
      _
    %590 = vsyncpa [#allocation3], 1
    %591 = vsyncpa [#allocation6], 1
    %592 = vsyncpa [#allocation9], 1
    %593 = vsyncpa [#allocation12], 1
    %594 = vsyncpa [#allocation4], 1

</llo_original>
